<compile_context>
chip_gen: v7x
topology: tpu7x:2x2x1
jax: 0.10.0
libtpu: 0.0.40
codegen_flags: <defaults>
</compile_context>

<pallas_src>
import functools

import jax
import jax.numpy as jnp
from jax import lax
from jax.experimental import pallas as pl
from jax.experimental.pallas import tpu as pltpu


def _round_up(v, m):
    return (v + m - 1) // m * m


def softmax_loss_kernel(x_ref, wt_ref, y_ref, sum_ref, cnt_ref, *,
                        num_classes, ignore_index):
    # Native-dtype operands straight into the MXU; f32 accumulator.
    logits = lax.dot_general(
        x_ref[...], wt_ref[...],
        dimension_numbers=(((1,), (0,)), ((), ())),
        preferred_element_type=jnp.float32,
    )                                                       # (TB, C_pad) f32

    col = lax.broadcasted_iota(jnp.int32, logits.shape, 1)  # (TB, C_pad)
    # Mask zero-padded class columns so they don't contribute to the LSE.
    logits = jnp.where(col < num_classes, logits, -jnp.inf)

    # Numerically stable log-sum-exp (exp runs on the EUP slot — free next to the MXU).
    m = jnp.max(logits, axis=-1, keepdims=True)             # (TB, 1)
    lse = m + jnp.log(jnp.sum(jnp.exp(logits - m), axis=-1, keepdims=True))

    y = y_ref[...]                                          # (TB, 1) int32
    # One-hot select + lane reduce (XLU) — no gather DMA.
    target = jnp.sum(jnp.where(col == y, logits, 0.0), axis=-1, keepdims=True)

    valid = (y != ignore_index) & (y >= 0) & (y < num_classes)   # (TB, 1) bool
    per_sample = jnp.where(valid, lse - target, 0.0)             # (TB, 1)

    # Per-block partials as SMEM scalars (parallel across grid steps / TensorCores).
    sum_ref[0, 0] = jnp.sum(per_sample)
    cnt_ref[0, 0] = jnp.sum(valid.astype(jnp.float32))


def softmax_loss(x, class_attributes, y, *, ignore_index=-100, block_b=None):
    """x: (B, A), class_attributes: (C, A), y: (B, 1) int class indices. Returns scalar loss."""
    B, A = x.shape
    C, A2 = class_attributes.shape
    assert A == A2, (A, A2)

    # Pre-transpose the weight once: contraction becomes a plain (B,A)@(A,C).
    w_t = class_attributes.T                                 # (A, C)

    A_pad = _round_up(A, 128)
    C_pad = _round_up(C, 128)
    if block_b is None:
        block_b = 512 if B >= 512 else _round_up(B, 8)
    num_blocks = pl.cdiv(B, block_b)
    B_pad = num_blocks * block_b

    x_p = jnp.pad(x, ((0, B_pad - B), (0, A_pad - A)))
    w_p = jnp.pad(w_t, ((0, A_pad - A), (0, C_pad - C)))
    y_p = jnp.pad(y.reshape(B, 1).astype(jnp.int32), ((0, B_pad - B), (0, 0)),
                  constant_values=ignore_index)              # padded rows -> ignored

    kernel = functools.partial(
        softmax_loss_kernel, num_classes=C, ignore_index=ignore_index)

    # Per-step VMEM budget (double-buffered x, resident weight, f32 logits) + headroom.
    per_step_bytes = (2 * block_b * A_pad * x_p.dtype.itemsize
                      + A_pad * C_pad * w_p.dtype.itemsize
                      + 2 * block_b * 4
                      + 2 * block_b * C_pad * 4)
    vmem_limit = int(min(48 * 2**20, max(32 * 2**20, 2 * per_step_bytes)))

    cost = pl.CostEstimate(
        flops=2 * B * A * C,
        transcendentals=B * C,
        bytes_accessed=(x_p.size * x_p.dtype.itemsize
                        + w_p.size * w_p.dtype.itemsize
                        + y_p.size * 4 + 2 * num_blocks * 4),
    )

    partial_sums, partial_cnts = pl.pallas_call(
        kernel,
        out_shape=(jax.ShapeDtypeStruct((num_blocks, 1), jnp.float32),
                   jax.ShapeDtypeStruct((num_blocks, 1), jnp.float32)),
        grid_spec=pltpu.PrefetchScalarGridSpec(
            num_scalar_prefetch=0,
            grid=(num_blocks,),
            in_specs=[
                pl.BlockSpec((block_b, A_pad), lambda i: (i, 0)),   # x tile (pipelined)
                pl.BlockSpec((A_pad, C_pad), lambda i: (0, 0)),     # weight: VMEM-resident
                pl.BlockSpec((block_b, 1), lambda i: (i, 0)),       # labels
            ],
            out_specs=(
                pl.BlockSpec((1, 1), lambda i: (i, 0),
                             memory_space=pltpu.MemorySpace.SMEM),
                pl.BlockSpec((1, 1), lambda i: (i, 0),
                             memory_space=pltpu.MemorySpace.SMEM),
            ),
        ),
        compiler_params=pltpu.CompilerParams(
            dimension_semantics=("parallel",),
            vmem_limit_bytes=vmem_limit,
        ),
        cost_estimate=cost,
    )(x_p, w_p, y_p)

    # Tiny final reduction in JAX: mean over non-ignored targets.
    return jnp.sum(partial_sums) / jnp.sum(partial_cnts)


def softmax_loss_ref(x, class_attributes, y, ignore_index=-100):
    logits = x.astype(jnp.float32) @ class_attributes.astype(jnp.float32).T
    logp = jax.nn.log_softmax(logits, axis=-1)
    idx = y.reshape(-1).astype(jnp.int32)
    valid = idx != ignore_index
    per = -logp[jnp.arange(logits.shape[0]), jnp.where(valid, idx, 0)]
    return jnp.sum(jnp.where(valid, per, 0.0)) / jnp.sum(valid)


if __name__ == "__main__":
    key = jax.random.PRNGKey(0)
    k1, k2, k3 = jax.random.split(key, 3)

    batch, num_attributes, num_classes = 8, 32, 16
    x = jax.random.normal(k1, (batch, num_attributes), dtype=jnp.float32)
    class_attributes = jax.random.normal(
        k2, (num_classes, num_attributes), dtype=jnp.float32)
    y = jax.random.randint(k3, (batch, 1), 0, num_classes, dtype=jnp.int32)

    # f32 path (tight tolerance vs f32 reference).
    loss = softmax_loss(x, class_attributes, y)
    jax.block_until_ready(loss)
    ref = softmax_loss_ref(x, class_attributes, y)
    assert jnp.allclose(loss, ref, atol=1e-5, rtol=1e-5), (loss, ref)

    # bf16 operand path: native-rate MXU matmul with f32 accumulation (looser tolerance).
    loss_bf16 = softmax_loss(x.astype(jnp.bfloat16),
                             class_attributes.astype(jnp.bfloat16), y)
    jax.block_until_ready(loss_bf16)
    assert jnp.allclose(loss_bf16, ref, atol=1e-1, rtol=1e-1), (loss_bf16, ref)

    print("KERNEL_OK")
</pallas_src>

<mosaic_0001>
module attributes {stable_mosaic.version = 11 : i64} {
  func.func @softmax_loss_kernel(%arg0: i32, %arg1: memref<8x128xf32, #tpu.memory_space<vmem>>, %arg2: memref<128x128xf32, #tpu.memory_space<vmem>>, %arg3: memref<8x1xi32, #tpu.memory_space<vmem>>, %arg4: memref<1x1xf32, #tpu.memory_space<smem>>, %arg5: memref<1x1xf32, #tpu.memory_space<smem>>) attributes {dimension_semantics = [#tpu.dimension_semantics<parallel>], iteration_bounds = array<i64: 1>, scalar_prefetch = 0 : i64, scratch_operands = 0 : i64, tpu.core_type = #tpu.core_type<tc>, window_params = [{transform_indices = @transform_0, window_bounds = array<i64: 8, 128>}, {pipeline_mode = #tpu.pipeline_mode<synchronous>, transform_indices = @transform_1, window_bounds = array<i64: 128, 128>}, {transform_indices = @transform_2, window_bounds = array<i64: 8, 1>}, {transform_indices = @transform_3, window_bounds = array<i64: 1, 1>}, {transform_indices = @transform_4, window_bounds = array<i64: 1, 1>}]} {
    %c0 = arith.constant 0 : index
    %c0_0 = arith.constant 0 : index
    %0 = vector.load %arg1[%c0, %c0_0] : memref<8x128xf32, #tpu.memory_space<vmem>>, vector<8x128xf32>
    %c0_1 = arith.constant 0 : index
    %c0_2 = arith.constant 0 : index
    %1 = vector.load %arg2[%c0_1, %c0_2] : memref<128x128xf32, #tpu.memory_space<vmem>>, vector<128x128xf32>
    %cst = arith.constant dense<0.000000e+00> : vector<8x128xf32>
    %2 = tpu.matmul %0, %1, %cst {dimension_numbers = #tpu.dot_dimension_numbers<[1], [0], [0], [1], [0, 0, 1, 1], [], []>} : vector<8x128xf32>, vector<128x128xf32>, vector<8x128xf32> -> vector<8x128xf32>
    %3 = tpu.iota {dimensions = array<i32: 1>} : vector<8x128xi32>
    %c16_i32 = arith.constant 16 : i32
    %4 = vector.broadcast %c16_i32 : i32 to vector<8x128xi32>
    %5 = arith.cmpi slt, %3, %4 : vector<8x128xi32>
    %cst_3 = arith.constant 0xFF800000 : f32
    %6 = vector.broadcast %cst_3 : f32 to vector<8x128xf32>
    %7 = arith.select %5, %2, %6 : vector<8x128xi1>, vector<8x128xf32>
    %cst_4 = arith.constant dense<0xFF800000> : vector<8xf32>
    %8 = vector.multi_reduction <maximumf>, %7, %cst_4 [1] : vector<8x128xf32> to vector<8xf32>
    %9 = vector.shape_cast %8 : vector<8xf32> to vector<8x1xf32>
    %10 = vector.broadcast %9 : vector<8x1xf32> to vector<8x128xf32>
    %11 = arith.subf %7, %10 : vector<8x128xf32>
    %12 = math.exp %11 : vector<8x128xf32>
    %cst_5 = arith.constant dense<0.000000e+00> : vector<8xf32>
    %13 = vector.multi_reduction <add>, %12, %cst_5 [1] : vector<8x128xf32> to vector<8xf32>
    %14 = vector.shape_cast %13 : vector<8xf32> to vector<8x1xf32>
    %15 = math.log %14 : vector<8x1xf32>
    %16 = arith.addf %9, %15 : vector<8x1xf32>
    %c0_6 = arith.constant 0 : index
    %c0_7 = arith.constant 0 : index
    %17 = vector.load %arg3[%c0_6, %c0_7] : memref<8x1xi32, #tpu.memory_space<vmem>>, vector<8x1xi32>
    %18 = vector.broadcast %17 : vector<8x1xi32> to vector<8x128xi32>
    %19 = arith.cmpi eq, %3, %18 : vector<8x128xi32>
    %cst_8 = arith.constant 0.000000e+00 : f32
    %20 = vector.broadcast %cst_8 : f32 to vector<8x128xf32>
    %21 = arith.select %19, %7, %20 : vector<8x128xi1>, vector<8x128xf32>
    %cst_9 = arith.constant dense<0.000000e+00> : vector<8xf32>
    %22 = vector.multi_reduction <add>, %21, %cst_9 [1] : vector<8x128xf32> to vector<8xf32>
    %23 = vector.shape_cast %22 : vector<8xf32> to vector<8x1xf32>
    %c-100_i32 = arith.constant -100 : i32
    %24 = vector.broadcast %c-100_i32 : i32 to vector<8x1xi32>
    %25 = arith.cmpi ne, %17, %24 : vector<8x1xi32>
    %c0_i32 = arith.constant 0 : i32
    %26 = vector.broadcast %c0_i32 : i32 to vector<8x1xi32>
    %27 = arith.cmpi sge, %17, %26 : vector<8x1xi32>
    %28 = arith.andi %25, %27 : vector<8x1xi1>
    %c16_i32_10 = arith.constant 16 : i32
    %29 = vector.broadcast %c16_i32_10 : i32 to vector<8x1xi32>
    %30 = arith.cmpi slt, %17, %29 : vector<8x1xi32>
    %31 = arith.andi %28, %30 : vector<8x1xi1>
    %32 = arith.subf %16, %23 : vector<8x1xf32>
    %cst_11 = arith.constant 0.000000e+00 : f32
    %33 = vector.broadcast %cst_11 : f32 to vector<8x1xf32>
    %34 = arith.select %31, %32, %33 : vector<8x1xi1>, vector<8x1xf32>
    %35 = vector.shape_cast %34 : vector<8x1xf32> to vector<1x8x1xf32>
    %cst_12 = arith.constant dense<0.000000e+00> : vector<1xf32>
    %36 = vector.multi_reduction <add>, %35, %cst_12 [1, 2] : vector<1x8x1xf32> to vector<1xf32>
    %37 = vector.shape_cast %36 : vector<1xf32> to vector<1x1x1xf32>
    %38 = vector.extract %37[0, 0, 0] : f32 from vector<1x1x1xf32>
    %c0_13 = arith.constant 0 : index
    %c0_14 = arith.constant 0 : index
    %39 = memref.load %arg4[%c0_13, %c0_14] : memref<1x1xf32, #tpu.memory_space<smem>>
    memref.store %38, %arg4[%c0_13, %c0_14] : memref<1x1xf32, #tpu.memory_space<smem>>
    %40 = arith.extui %31 : vector<8x1xi1> to vector<8x1xi32>
    %41 = arith.sitofp %40 : vector<8x1xi32> to vector<8x1xf32>
    %42 = vector.shape_cast %41 : vector<8x1xf32> to vector<1x8x1xf32>
    %cst_15 = arith.constant dense<0.000000e+00> : vector<1xf32>
    %43 = vector.multi_reduction <add>, %42, %cst_15 [1, 2] : vector<1x8x1xf32> to vector<1xf32>
    %44 = vector.shape_cast %43 : vector<1xf32> to vector<1x1x1xf32>
    %45 = vector.extract %44[0, 0, 0] : f32 from vector<1x1x1xf32>
    %c0_16 = arith.constant 0 : index
    %c0_17 = arith.constant 0 : index
    %46 = memref.load %arg5[%c0_16, %c0_17] : memref<1x1xf32, #tpu.memory_space<smem>>
    memref.store %45, %arg5[%c0_16, %c0_17] : memref<1x1xf32, #tpu.memory_space<smem>>
    return
  }
  func.func @transform_0(%arg0: i32) -> (i32, i32) {
    %c0_i32 = arith.constant 0 : i32
    %c0_i32_0 = arith.constant 0 : i32
    return %arg0, %c0_i32 : i32, i32
  }
  func.func @transform_1(%arg0: i32) -> (i32, i32) {
    %c0_i32 = arith.constant 0 : i32
    %c0_i32_0 = arith.constant 0 : i32
    %c0_i32_1 = arith.constant 0 : i32
    return %c0_i32, %c0_i32_0 : i32, i32
  }
  func.func @transform_2(%arg0: i32) -> (i32, i32) {
    %c0_i32 = arith.constant 0 : i32
    %c0_i32_0 = arith.constant 0 : i32
    return %arg0, %c0_i32 : i32, i32
  }
  func.func @transform_3(%arg0: i32) -> (i32, i32) {
    %c0_i32 = arith.constant 0 : i32
    %c0_i32_0 = arith.constant 0 : i32
    return %arg0, %c0_i32 : i32, i32
  }
  func.func @transform_4(%arg0: i32) -> (i32, i32) {
    %c0_i32 = arith.constant 0 : i32
    %c0_i32_0 = arith.constant 0 : i32
    return %arg0, %c0_i32 : i32, i32
  }
}

</mosaic_0001>

<llo_original>
// kernel: tpu_custom_call.1
$region0: #{tpu_custom_call.1}
  #allocation0 [shape = 'u32[]', space=smem, size = 0x4, offset = 0x4, fixed_abs, tag = 'smem constant byte address 0x4 - core index']
  #allocation1 [shape = 'u32[144,128]{1,0:T(1,128)}', space=vmem, size = 0x12000, scoped, tag = 'internal scratch']
  %s0 = inlined_call_operand.vmem [shape: f32[8,128], index: 0, kind: input, shape index: {}]
  %s1 = inlined_call_operand.hbm [shape: f32[128,128], index: 1, kind: input, shape index: {}]
  %s2 = inlined_call_operand.vmem [shape: s32[8,1], index: 2, kind: input, shape index: {}]
  %s3 = inlined_call_operand.hbm [shape: f32[1,1], index: 3, kind: output, shape index: {0}]
  %s4 = inlined_call_operand.hbm [shape: f32[1,1], index: 4, kind: output, shape index: {1}]
  %5 = xla_tuple %s3, %s4
  %s6 = sld [smem:[#allocation0]]
  $region34: #{tpu_custom_call.1} parent=0
    _
  %s8 = ssub.s32 1, %s6
  %s9 = scalar_select 0, %s8, %s6
  $region1: #{tpu_custom_call.1} parent=0
    #allocation2 [shape = 'u8[65536]{0}', space=vmem, size = 0x10000, scoped, tag = 'input window, operand 1, single buffered']
    #allocation3 [shape = 's32[1]{0}', space=sflag, size = 0x4, scoped, tag = 'scoped memory for tpu_custom_call.1']
    #allocation4 [shape = 's32[1]{0}', space=sflag, size = 0x4, scoped, tag = 'scoped memory for tpu_custom_call.1']
    #allocation5 [shape = 'u8[512]{0}', space=smem, size = 0x200, scoped, tag = 'output window, operand 0, single buffered']
    #allocation6 [shape = 'u8[512]{0}', space=smem, size = 0x200, scoped, tag = 'output window, operand 1, single buffered']
    #allocation7 [shape = 's32[1]{0}', space=sflag, size = 0x4, scoped, tag = 'scoped memory for tpu_custom_call.1']
    %10 = vsyncpa [#allocation3], 0
    %11 = vsyncpa [#allocation4], 0
    %12 = vsyncpa [#allocation7], 0
    // Predicated region
    $region2: #{tpu_custom_call.1} parent=1 // pred_check
      _
    $region3: #{tpu_custom_call.1} parent=1 // pred_check_branch
      %14 = sbr.rel (0) target = $region5
    $region4: #{tpu_custom_call.1} parent=1 // pred_region
      _
    $region5: #{tpu_custom_call.1} parent=1 // pred_fallthru
      _
    // Predicated region
    $region6: #{tpu_custom_call.1} parent=1 // pred_check
      _
    $region7: #{tpu_custom_call.1} parent=1 // pred_check_branch
      %16 = sbr.rel (0) target = $region9
    $region8: #{tpu_custom_call.1} parent=1 // pred_region
      %s18 = ssub.s32 2048, 2048
      %19 = vsyncadd [#allocation3], %s18
      %s20 = sshll.u32 [#allocation2], 4
      %s21 = int_to_ptr.vmem [resolvable:$true] %s20
      %26 = dma.hbm_to_vmem [thread:$0]  %s1, 2048, %s21, [#allocation3], 128, 128, 8
    $region9: #{tpu_custom_call.1} parent=1 // pred_fallthru
      _
    // Predicated region
    $region10: #{tpu_custom_call.1} parent=1 // pred_check
      _
    $region11: #{tpu_custom_call.1} parent=1 // pred_check_branch
      %28 = sbr.rel (0) target = $region13
    $region12: #{tpu_custom_call.1} parent=1 // pred_region
      _
    $region13: #{tpu_custom_call.1} parent=1 // pred_fallthru
      _
    // Predicated region
    $region14: #{tpu_custom_call.1} parent=1 // pred_check
      _
    $region15: #{tpu_custom_call.1} parent=1 // pred_check_branch
      %30 = sbr.rel (0) target = $region17
    $region16: #{tpu_custom_call.1} parent=1 // pred_region
      %31 = dma.done [#allocation3], 2048
    $region17: #{tpu_custom_call.1} parent=1 // pred_fallthru
      _
    %v32 = vld [vmem:[%s0] sm:$0xff]
    %v33 = vld [vmem:[#allocation2] sm:$0xff]
    %v34 = vld [vmem:[#allocation2 + $0x8] sm:$0xff]
    %v35 = vld [vmem:[#allocation2 + $0x10] sm:$0xff]
    %v36 = vld [vmem:[#allocation2 + $0x18] sm:$0xff]
    %v37 = vld [vmem:[#allocation2 + $0x20] sm:$0xff]
    %v38 = vld [vmem:[#allocation2 + $0x28] sm:$0xff]
    %v39 = vld [vmem:[#allocation2 + $0x30] sm:$0xff]
    %v40 = vld [vmem:[#allocation2 + $0x38] sm:$0xff]
    %v41 = vld [vmem:[#allocation2 + $0x40] sm:$0xff]
    %v42 = vld [vmem:[#allocation2 + $0x48] sm:$0xff]
    %v43 = vld [vmem:[#allocation2 + $0x50] sm:$0xff]
    %v44 = vld [vmem:[#allocation2 + $0x58] sm:$0xff]
    %v45 = vld [vmem:[#allocation2 + $0x60] sm:$0xff]
    %v46 = vld [vmem:[#allocation2 + $0x68] sm:$0xff]
    %v47 = vld [vmem:[#allocation2 + $0x70] sm:$0xff]
    %v48 = vld [vmem:[#allocation2 + $0x78] sm:$0xff]
    %49 = vmatprep.subr.mxu0 0.0
    %50 = vmatpush1.msra.mxu0 %v33
    %51 = vmatprep.subr.mxu0 0.0
    %52 = vmatpush1.msra.mxu0 %v34
    %53 = vmatprep.subr.mxu0 0.0
    %54 = vmatpush1.msra.mxu0 %v35
    %55 = vmatprep.subr.mxu0 0.0
    %56 = vmatpush1.msra.mxu0 %v36
    %57 = vmatprep.subr.mxu0 0.0
    %58 = vmatpush1.msra.mxu0 %v37
    %59 = vmatprep.subr.mxu0 0.0
    %60 = vmatpush1.msra.mxu0 %v38
    %61 = vmatprep.subr.mxu0 0.0
    %62 = vmatpush1.msra.mxu0 %v39
    %63 = vmatprep.subr.mxu0 0.0
    %64 = vmatpush1.msra.mxu0 %v40
    %65 = vmatprep.subr.mxu0 0.0
    %66 = vmatpush1.msra.mxu0 %v41
    %67 = vmatprep.subr.mxu0 0.0
    %68 = vmatpush1.msra.mxu0 %v42
    %69 = vmatprep.subr.mxu0 0.0
    %70 = vmatpush1.msra.mxu0 %v43
    %71 = vmatprep.subr.mxu0 0.0
    %72 = vmatpush1.msra.mxu0 %v44
    %73 = vmatprep.subr.mxu0 0.0
    %74 = vmatpush1.msra.mxu0 %v45
    %75 = vmatprep.subr.mxu0 0.0
    %76 = vmatpush1.msra.mxu0 %v46
    %77 = vmatprep.subr.mxu0 0.0
    %78 = vmatpush1.msra.mxu0 %v47
    %79 = vmatprep.subr.mxu0 0.0
    %80 = vmatpush1.msra.mxu0 %v48
    %81 = vmatprep.subr.mxu0 0.0
    %82 = vmatpush1.msra.mxu0 0.0
    %83 = vmatprep.subr.mxu0 0.0
    %84 = vmatpush1.msra.mxu0 0.0
    %85 = vmatprep.subr.mxu0 0.0
    %86 = vmatpush1.msra.mxu0 0.0
    %87 = vmatprep.subr.mxu0 0.0
    %88 = vmatpush1.msra.mxu0 0.0
    %89 = vmatprep.subr.mxu0 0.0
    %90 = vmatpush1.msra.mxu0 0.0
    %91 = vmatprep.subr.mxu0 0.0
    %92 = vmatpush1.msra.mxu0 0.0
    %93 = vmatprep.subr.mxu0 0.0
    %94 = vmatpush1.msra.mxu0 0.0
    %95 = vmatprep.subr.mxu0 0.0
    %96 = vmatpush1.msra.mxu0 0.0
    %97 = vmatprep.subr.mxu0 0.0
    %98 = vmatpush1.msra.mxu0 0.0
    %99 = vmatprep.subr.mxu0 0.0
    %100 = vmatpush1.msra.mxu0 0.0
    %101 = vmatprep.subr.mxu0 0.0
    %102 = vmatpush1.msra.mxu0 0.0
    %103 = vmatprep.subr.mxu0 0.0
    %104 = vmatpush1.msra.mxu0 0.0
    %105 = vmatprep.subr.mxu0 0.0
    %106 = vmatpush1.msra.mxu0 0.0
    %107 = vmatprep.subr.mxu0 0.0
    %108 = vmatpush1.msra.mxu0 0.0
    %109 = vmatprep.subr.mxu0 0.0
    %110 = vmatpush1.msra.mxu0 0.0
    %111 = vmatprep.subr.mxu0 0.0
    %112 = vmatpush1.msra.mxu0 0.0
    %113 = vmatprep.mubr.f32.mxu0 0.0
    %114 = vmatmul.mubr.f32.gmra.mrb[0].mxu0 %v32
    %v115 = vpop.f32.mrb[0].mxu0
    %v116 = vadd.f32 0.0, %v115
    %v117 = vpop.f32.mrb[0].mxu0
    %118 = vdwg.mxu0
    %v119 = vlaneseq
    %v120 = vand.u32 %v119, 127
    %vm121 = vcmp.lt.s32.totalorder %v120, 16
    %v122 = vsel %vm121, %v116, -inf
    %123 = vmax.xlane.f32.xlu0 %v122
    %v124 = vpop.xlane.xlu0 %123
    %v125 = vsub.f32 %v122, %v124
    %v126 = vmul.f32 %v125, 1.442695
    %v127 = vpow.pop %v126
    %128 = vadd.xlane.f32.xlu0 %v127
    %v129 = vpop.xlane.xlu0 %128
    %v130 = vlog2.pop %v129
    %v131 = vmul.f32 %v130, 0.6931472
    %v132 = vadd.f32 %v124, %v131
    %v133 = vld [vmem:[%s2] sm:$0xff]
    %134 = vset.pattern.permute.xlu0 0
    %135 = vperm.xlu0 %134, %v133
    %v136 = vpop.permute.xlu0 %135
    %vm137 = vcmp.eq.s32.totalorder %v120, %v136
    %v138 = vsel %vm137, %v122, 0.0
    %139 = vadd.xlane.f32.xlu0 %v138
    %v140 = vpop.xlane.xlu0 %139
    %vm141 = vcmp.ne.s32.totalorder %v133, 4294967196
    %vm142 = vcmp.ge.s32.totalorder %v133, 0
    %vm143 = vmand %vm141, %vm142
    %vm144 = vcmp.lt.s32.totalorder %v133, 16
    %vm145 = vmand %vm143, %vm144
    %v146 = vsub.f32 %v132, %v140
    %v147 = vsel %vm145, %v146, 0.0
    %vm148 = vcmask 7168
    %v149 = vsel %vm148, %v147, 0.0
    %150 = vadd.xlane.f32.xlu0 %v149
    %v151 = vpop.xlane.xlu0 %150
    %v152 = vrot.slane %v151, 4
    %v153 = vadd.f32 %v151, %v152
    %v154 = vrot.slane %v153, 2
    %v155 = vadd.f32 %v153, %v154
    %v156 = vrot.slane %v155, 1
    %v157 = vadd.f32 %v155, %v156
    %s158 = vtos %v157
    %s159 = scalar_lea.smem [#allocation5], 0
    %160 = sst [smem:[%s159]] %s158
    %v161 = vsel %vm145, 1, 0
    %v162 = vcvt.s32.f32 %v161
    %v163 = vsel %vm148, %v162, 0.0
    %164 = vadd.xlane.f32.xlu0 %v163
    %v165 = vpop.xlane.xlu0 %164
    %v166 = vrot.slane %v165, 4
    %v167 = vadd.f32 %v165, %v166
    %v168 = vrot.slane %v167, 2
    %v169 = vadd.f32 %v167, %v168
    %v170 = vrot.slane %v169, 1
    %v171 = vadd.f32 %v169, %v170
    %s172 = vtos %v171
    %s173 = scalar_lea.smem [#allocation6], 0
    %174 = sst [smem:[%s173]] %s172
    // Predicated region
    $region18: #{tpu_custom_call.1} parent=1 // pred_check
      _
    $region19: #{tpu_custom_call.1} parent=1 // pred_check_branch
      %176 = sbr.rel (0) target = $region21
    $region20: #{tpu_custom_call.1} parent=1 // pred_region
      %s178 = ssub.s32 16, 16
      %179 = vsyncadd [#allocation4], %s178
      %182 = dma.smem_to_hbm [#allocation5], 16, %s3, [#allocation4]
    $region21: #{tpu_custom_call.1} parent=1 // pred_fallthru
      _
    // Predicated region
    $region22: #{tpu_custom_call.1} parent=1 // pred_check
      _
    $region23: #{tpu_custom_call.1} parent=1 // pred_check_branch
      %184 = sbr.rel (0) target = $region25
    $region24: #{tpu_custom_call.1} parent=1 // pred_region
      %s186 = ssub.s32 16, 16
      %187 = vsyncadd [#allocation7], %s186
      %190 = dma.smem_to_hbm [#allocation6], 16, %s4, [#allocation7]
    $region25: #{tpu_custom_call.1} parent=1 // pred_fallthru
      _
    // Predicated region
    $region26: #{tpu_custom_call.1} parent=1 // pred_check
      _
    $region27: #{tpu_custom_call.1} parent=1 // pred_check_branch
      %192 = sbr.rel (0) target = $region29
    $region28: #{tpu_custom_call.1} parent=1 // pred_region
      %193 = dma.done [#allocation4], 16
    $region29: #{tpu_custom_call.1} parent=1 // pred_fallthru
      _
    // Predicated region
    $region30: #{tpu_custom_call.1} parent=1 // pred_check
      _
    $region31: #{tpu_custom_call.1} parent=1 // pred_check_branch
      %195 = sbr.rel (0) target = $region33
    $region32: #{tpu_custom_call.1} parent=1 // pred_region
      %196 = dma.done [#allocation7], 16
    $region33: #{tpu_custom_call.1} parent=1 // pred_fallthru
      _
    %197 = sfence
    %198 = vsyncpa [#allocation3], 1
    %199 = vsyncpa [#allocation4], 1
    %200 = vsyncpa [#allocation7], 1

</llo_original>
